<compile_context>
chip_gen: v6e
topology: v6e:2x2x1
jax: 0.10.0
libtpu: 0.0.40
codegen_flags: <defaults>
</compile_context>

<pallas_src>
import functools

import jax
import jax.numpy as jnp
import numpy as np
from jax.experimental import pallas as pl
from jax.experimental.pallas import tpu as pltpu

LATENT_DIMS = 2
IN_FEATURES = 20
HIDDEN = 15

# packed-weight block layout
PACK_ROWS = 72   # 4 layer bands of 16/16/16/24 rows (sublane-aligned starts)
PACK_COLS = 32
BIAS_COL = 24    # each layer's bias lives in this lane, one entry per output row


def _vae_kernel(x_ref, eps_ref, w_ref, out_ref, kl_ref):
    # x:   (20, TB)  features on sublanes, batch on lanes
    # eps: (2,  TB)  N(0,1) noise
    # w:   (72, 32)  packed weights + bias column (see pack_params)
    x = x_ref[...]
    eps = eps_ref[...]

    ew1 = w_ref[0:16, 0:IN_FEATURES]                    # (16, 20) enc linear1
    eb1 = w_ref[0:16, BIAS_COL:BIAS_COL + 1]            # (16, 1)
    ew23 = w_ref[16:32, 0:16]                           # rows 0:2 mu, rows 8:10 log_sigma
    eb23 = w_ref[16:32, BIAS_COL:BIAS_COL + 1]          # (16, 1)
    dw1 = w_ref[32:48, 0:LATENT_DIMS]                   # (16, 2) dec linear1
    db1 = w_ref[32:48, BIAS_COL:BIAS_COL + 1]           # (16, 1)
    dw2 = w_ref[48:48 + IN_FEATURES, 0:16]              # (20, 16) dec linear2
    db2 = w_ref[48:48 + IN_FEATURES, BIAS_COL:BIAS_COL + 1]  # (20, 1)

    # ---- VariationalEncoder ----
    h = jnp.maximum(jnp.dot(ew1, x, preferred_element_type=jnp.float32) + eb1, 0.0)   # (16, TB)
    mu_ls = jnp.dot(ew23, h, preferred_element_type=jnp.float32) + eb23               # (16, TB)

    mu = mu_ls[0:LATENT_DIMS, :]                        # (2, TB)
    ls = mu_ls[8:8 + LATENT_DIMS, :]                    # (2, TB) log_sigma
    sigma = jnp.exp(ls)

    # reparameterize: z = mu + sigma * eps
    z = mu + sigma * eps                                # (2, TB)

    # self.kl = (sigma**2 + mu**2 - log(sigma) - 1/2).sum()  — uses log_sigma directly.
    # Emitted as a lane-dense per-column partial; wrapper sums the valid columns.
    kl_ref[...] = jnp.sum(sigma * sigma + mu * mu - ls - 0.5, axis=0, keepdims=True)  # (1, TB)

    # ---- Decoder ----
    d = jnp.maximum(jnp.dot(dw1, z, preferred_element_type=jnp.float32) + db1, 0.0)   # (16, TB)
    logits = jnp.dot(dw2, d, preferred_element_type=jnp.float32) + db2                # (20, TB)
    out_ref[...] = jax.nn.sigmoid(logits)


def _round_up(x, m):
    return (x + m - 1) // m * m


def _choose_tile(batch, tile_b):
    tile_b = _round_up(max(tile_b, 128), 128)
    b128 = _round_up(batch, 128)
    tb = min(tile_b, b128)
    # Keep >= 2 grid steps when the batch allows so both v7x TensorCores get work
    # ("parallel" grid axis is sharded across cores); no effect on v5e/v6e.
    if b128 >= 256:
        tb = min(tb, _round_up(b128 // 2, 128))
    return tb


@functools.partial(jax.jit, static_argnames=("tile_b",))
def vae_forward(x_nchw, eps, wpack, *, tile_b=4096):
    """x_nchw: (B, 1, 1, 20) f32; eps: (B, 2) f32; wpack: (72, 32) packed weights."""
    B = x_nchw.shape[0]
    tile_b = _choose_tile(B, tile_b)
    b_pad = _round_up(B, tile_b)
    grid_b = b_pad // tile_b

    # batch-on-lanes layout: single transpose + lane pad, no extra row padding
    xT = jnp.pad(x_nchw.reshape(B, IN_FEATURES).T.astype(jnp.float32),
                 ((0, 0), (0, b_pad - B)))                       # (20, b_pad)
    epsT = jnp.pad(eps.T.astype(jnp.float32),
                   ((0, 0), (0, b_pad - B)))                     # (2, b_pad)

    flops_per_col = 2 * (16 * IN_FEATURES + 16 * 16 + 16 * LATENT_DIMS + IN_FEATURES * 16)
    recon_rows, kl_cols = pl.pallas_call(
        _vae_kernel,
        grid=(grid_b,),
        in_specs=[
            pl.BlockSpec((IN_FEATURES, tile_b), lambda i: (0, i)),
            pl.BlockSpec((LATENT_DIMS, tile_b), lambda i: (0, i)),
            pl.BlockSpec((PACK_ROWS, PACK_COLS), lambda i: (0, 0)),  # VMEM-resident weights
        ],
        out_specs=(
            pl.BlockSpec((IN_FEATURES, tile_b), lambda i: (0, i)),
            pl.BlockSpec((1, tile_b), lambda i: (0, i)),
        ),
        out_shape=(
            jax.ShapeDtypeStruct((IN_FEATURES, b_pad), jnp.float32),
            jax.ShapeDtypeStruct((1, b_pad), jnp.float32),
        ),
        compiler_params=pltpu.CompilerParams(
            dimension_semantics=("parallel",)),
        cost_estimate=pl.CostEstimate(
            flops=flops_per_col * b_pad,
            transcendentals=(LATENT_DIMS + IN_FEATURES) * b_pad,
            bytes_accessed=4 * ((2 * IN_FEATURES + LATENT_DIMS + 1) * b_pad
                                + PACK_ROWS * PACK_COLS)),
    )(xT, epsT, wpack)

    recon = recon_rows[:, :B].T.reshape(B, 1, 1, IN_FEATURES)
    kl = jnp.sum(kl_cols[0, :B])
    return recon, kl


def pack_params(p):
    """Pack all weights + biases into one (72, 32) f32 block.

    Weights are stored (out_row, in_col); each layer's bias sits in lane
    BIAS_COL (one entry per output row) and is applied as a broadcast add in
    the kernel.  Unused rows/cols are zero, so padded activation rows stay
    zero through every layer.
    """
    w = np.zeros((PACK_ROWS, PACK_COLS), np.float32)
    # encoder linear1: 20 -> 15
    w[0:15, 0:20] = np.asarray(p["ew1"]).T
    w[0:15, BIAS_COL] = np.asarray(p["eb1"]).reshape(-1)
    # fused encoder linear2 (mu, rows 16:18) + linear3 (log_sigma, rows 24:26)
    w[16:18, 0:15] = np.asarray(p["ew2"]).T
    w[16:18, BIAS_COL] = np.asarray(p["eb2"]).reshape(-1)
    w[24:26, 0:15] = np.asarray(p["ew3"]).T
    w[24:26, BIAS_COL] = np.asarray(p["eb3"]).reshape(-1)
    # decoder linear1: 2 -> 15
    w[32:47, 0:2] = np.asarray(p["dw1"]).T
    w[32:47, BIAS_COL] = np.asarray(p["db1"]).reshape(-1)
    # decoder linear2: 15 -> 20
    w[48:68, 0:15] = np.asarray(p["dw2"]).T
    w[48:68, BIAS_COL] = np.asarray(p["db2"]).reshape(-1)
    return jnp.asarray(w)


def init_params(key):
    """Deterministic init mirroring nn.Linear shapes; stored as (in, out)."""
    def linear(k, fan_in, fan_out):
        kw, kb = jax.random.split(k)
        bound = 1.0 / np.sqrt(fan_in)
        w = jax.random.uniform(kw, (fan_in, fan_out), jnp.float32, -bound, bound)
        b = jax.random.uniform(kb, (1, fan_out), jnp.float32, -bound, bound)
        return w, b

    keys = jax.random.split(key, 5)
    p = {}
    p["ew1"], p["eb1"] = linear(keys[0], IN_FEATURES, HIDDEN)     # enc linear1 20->15
    p["ew2"], p["eb2"] = linear(keys[1], HIDDEN, LATENT_DIMS)     # enc linear2 15->2 (mu)
    p["ew3"], p["eb3"] = linear(keys[2], HIDDEN, LATENT_DIMS)     # enc linear3 15->2 (log sigma)
    p["dw1"], p["db1"] = linear(keys[3], LATENT_DIMS, HIDDEN)     # dec linear1 2->15
    p["dw2"], p["db2"] = linear(keys[4], HIDDEN, IN_FEATURES)     # dec linear2 15->20
    return p


def reference_forward(x_nchw, eps, p):
    """Pure-JAX reference for verification."""
    B = x_nchw.shape[0]
    x = x_nchw.reshape(B, IN_FEATURES)
    h = jnp.maximum(x @ p["ew1"] + p["eb1"], 0.0)
    mu = h @ p["ew2"] + p["eb2"]
    sigma = jnp.exp(h @ p["ew3"] + p["eb3"])
    z = mu + sigma * eps
    kl = jnp.sum(sigma ** 2 + mu ** 2 - jnp.log(sigma) - 0.5)
    d = jnp.maximum(z @ p["dw1"] + p["db1"], 0.0)
    out = jax.nn.sigmoid(d @ p["dw2"] + p["db2"])
    return out.reshape(B, 1, 1, IN_FEATURES), kl


if __name__ == "__main__":
    key = jax.random.PRNGKey(0)
    k_params, k_x, k_eps = jax.random.split(key, 3)

    params = init_params(k_params)
    wpack = pack_params(params)

    # B=8  -> single 128-column tile; B=260 -> 256-column tiles, grid=(2,)
    for B in (8, 260):
        kx = jax.random.fold_in(k_x, B)
        keps = jax.random.fold_in(k_eps, B)
        x = jax.random.normal(kx, (B, 1, 1, IN_FEATURES), jnp.float32)   # NCHW-style
        eps = jax.random.normal(keps, (B, LATENT_DIMS), jnp.float32)     # N(0,1) sample

        recon, kl = vae_forward(x, eps, wpack)
        recon = jax.block_until_ready(recon)
        kl = jax.block_until_ready(kl)

        ref_recon, ref_kl = reference_forward(x, eps, params)
        assert recon.shape == (B, 1, 1, IN_FEATURES)
        assert np.allclose(np.asarray(recon), np.asarray(ref_recon), atol=1e-3, rtol=1e-3), \
            float(np.max(np.abs(np.asarray(recon) - np.asarray(ref_recon))))
        assert np.allclose(float(kl), float(ref_kl), atol=1e-3, rtol=1e-3), \
            (float(kl), float(ref_kl))

    print("KERNEL_OK")
</pallas_src>

<mosaic_0001>
module attributes {stable_mosaic.version = 11 : i64} {
  func.func @_vae_kernel(%arg0: i32, %arg1: memref<20x128xf32, #tpu.memory_space<vmem>>, %arg2: memref<2x128xf32, #tpu.memory_space<vmem>>, %arg3: memref<72x32xf32, #tpu.memory_space<vmem>>, %arg4: memref<20x128xf32, #tpu.memory_space<vmem>>, %arg5: memref<1x128xf32, #tpu.memory_space<vmem>>) attributes {dimension_semantics = [#tpu.dimension_semantics<parallel>], iteration_bounds = array<i64: 1>, scalar_prefetch = 0 : i64, scratch_operands = 0 : i64, tpu.core_type = #tpu.core_type<tc>, window_params = [{transform_indices = @transform_0, window_bounds = array<i64: 20, 128>}, {transform_indices = @transform_1, window_bounds = array<i64: 2, 128>}, {pipeline_mode = #tpu.pipeline_mode<synchronous>, transform_indices = @transform_2, window_bounds = array<i64: 72, 32>}, {transform_indices = @transform_3, window_bounds = array<i64: 20, 128>}, {transform_indices = @transform_4, window_bounds = array<i64: 1, 128>}]} {
    %c0 = arith.constant 0 : index
    %c0_0 = arith.constant 0 : index
    %0 = vector.load %arg1[%c0, %c0_0] : memref<20x128xf32, #tpu.memory_space<vmem>>, vector<20x128xf32>
    %c0_1 = arith.constant 0 : index
    %c0_2 = arith.constant 0 : index
    %1 = vector.load %arg2[%c0_1, %c0_2] : memref<2x128xf32, #tpu.memory_space<vmem>>, vector<2x128xf32>
    %c0_3 = arith.constant 0 : index
    %c0_4 = arith.constant 0 : index
    %2 = vector.load %arg3[%c0_3, %c0_4] : memref<72x32xf32, #tpu.memory_space<vmem>>, vector<16x20xf32>
    %c0_5 = arith.constant 0 : index
    %c24 = arith.constant 24 : index
    %3 = vector.load %arg3[%c0_5, %c24] : memref<72x32xf32, #tpu.memory_space<vmem>>, vector<16x1xf32>
    %c16 = arith.constant 16 : index
    %c0_6 = arith.constant 0 : index
    %4 = vector.load %arg3[%c16, %c0_6] : memref<72x32xf32, #tpu.memory_space<vmem>>, vector<16x16xf32>
    %c16_7 = arith.constant 16 : index
    %c24_8 = arith.constant 24 : index
    %5 = vector.load %arg3[%c16_7, %c24_8] : memref<72x32xf32, #tpu.memory_space<vmem>>, vector<16x1xf32>
    %c32 = arith.constant 32 : index
    %c0_9 = arith.constant 0 : index
    %6 = vector.load %arg3[%c32, %c0_9] : memref<72x32xf32, #tpu.memory_space<vmem>>, vector<16x2xf32>
    %c32_10 = arith.constant 32 : index
    %c24_11 = arith.constant 24 : index
    %7 = vector.load %arg3[%c32_10, %c24_11] : memref<72x32xf32, #tpu.memory_space<vmem>>, vector<16x1xf32>
    %c48 = arith.constant 48 : index
    %c0_12 = arith.constant 0 : index
    %8 = vector.load %arg3[%c48, %c0_12] : memref<72x32xf32, #tpu.memory_space<vmem>>, vector<20x16xf32>
    %c48_13 = arith.constant 48 : index
    %c24_14 = arith.constant 24 : index
    %9 = vector.load %arg3[%c48_13, %c24_14] : memref<72x32xf32, #tpu.memory_space<vmem>>, vector<20x1xf32>
    %cst = arith.constant dense<0.000000e+00> : vector<16x128xf32>
    %10 = tpu.matmul %2, %0, %cst {dimension_numbers = #tpu.dot_dimension_numbers<[1], [0], [0], [1], [0, 0, 1, 1], [], []>} : vector<16x20xf32>, vector<20x128xf32>, vector<16x128xf32> -> vector<16x128xf32>
    %11 = vector.broadcast %3 : vector<16x1xf32> to vector<16x128xf32>
    %12 = arith.addf %10, %11 : vector<16x128xf32>
    %cst_15 = arith.constant 0.000000e+00 : f32
    %13 = vector.broadcast %cst_15 : f32 to vector<16x128xf32>
    %14 = arith.maximumf %12, %13 : vector<16x128xf32>
    %cst_16 = arith.constant dense<0.000000e+00> : vector<16x128xf32>
    %15 = tpu.matmul %4, %14, %cst_16 {dimension_numbers = #tpu.dot_dimension_numbers<[1], [0], [0], [1], [0, 0, 1, 1], [], []>} : vector<16x16xf32>, vector<16x128xf32>, vector<16x128xf32> -> vector<16x128xf32>
    %16 = vector.broadcast %5 : vector<16x1xf32> to vector<16x128xf32>
    %17 = arith.addf %15, %16 : vector<16x128xf32>
    %18 = vector.extract_strided_slice %17 {offsets = [0, 0], sizes = [2, 128], strides = [1, 1]} : vector<16x128xf32> to vector<2x128xf32>
    %19 = vector.extract_strided_slice %17 {offsets = [8, 0], sizes = [2, 128], strides = [1, 1]} : vector<16x128xf32> to vector<2x128xf32>
    %20 = math.exp %19 : vector<2x128xf32>
    %21 = arith.mulf %20, %1 : vector<2x128xf32>
    %22 = arith.addf %18, %21 : vector<2x128xf32>
    %23 = arith.mulf %20, %20 : vector<2x128xf32>
    %24 = arith.mulf %18, %18 : vector<2x128xf32>
    %25 = arith.addf %23, %24 : vector<2x128xf32>
    %26 = arith.subf %25, %19 : vector<2x128xf32>
    %cst_17 = arith.constant 5.000000e-01 : f32
    %27 = vector.broadcast %cst_17 : f32 to vector<2x128xf32>
    %28 = arith.subf %26, %27 : vector<2x128xf32>
    %cst_18 = arith.constant dense<0.000000e+00> : vector<128xf32>
    %29 = vector.multi_reduction <add>, %28, %cst_18 [0] : vector<2x128xf32> to vector<128xf32>
    %30 = vector.shape_cast %29 : vector<128xf32> to vector<1x128xf32>
    %c0_19 = arith.constant 0 : index
    %c0_20 = arith.constant 0 : index
    %31 = vector.load %arg5[%c0_19, %c0_20] : memref<1x128xf32, #tpu.memory_space<vmem>>, vector<1x128xf32>
    tpu.vector_store %arg5[%c0_19, %c0_20], %30 {strides = array<i32>} : memref<1x128xf32, #tpu.memory_space<vmem>>, vector<1x128xf32>,
    %cst_21 = arith.constant dense<0.000000e+00> : vector<16x128xf32>
    %32 = tpu.matmul %6, %22, %cst_21 {dimension_numbers = #tpu.dot_dimension_numbers<[1], [0], [0], [1], [0, 0, 1, 1], [], []>} : vector<16x2xf32>, vector<2x128xf32>, vector<16x128xf32> -> vector<16x128xf32>
    %33 = vector.broadcast %7 : vector<16x1xf32> to vector<16x128xf32>
    %34 = arith.addf %32, %33 : vector<16x128xf32>
    %cst_22 = arith.constant 0.000000e+00 : f32
    %35 = vector.broadcast %cst_22 : f32 to vector<16x128xf32>
    %36 = arith.maximumf %34, %35 : vector<16x128xf32>
    %cst_23 = arith.constant dense<0.000000e+00> : vector<20x128xf32>
    %37 = tpu.matmul %8, %36, %cst_23 {dimension_numbers = #tpu.dot_dimension_numbers<[1], [0], [0], [1], [0, 0, 1, 1], [], []>} : vector<20x16xf32>, vector<16x128xf32>, vector<20x128xf32> -> vector<20x128xf32>
    %38 = vector.broadcast %9 : vector<20x1xf32> to vector<20x128xf32>
    %39 = arith.addf %37, %38 : vector<20x128xf32>
    %40 = arith.negf %39 : vector<20x128xf32>
    %41 = math.exp %40 : vector<20x128xf32>
    %cst_24 = arith.constant 1.000000e+00 : f32
    %42 = vector.broadcast %cst_24 : f32 to vector<20x128xf32>
    %43 = arith.addf %42, %41 : vector<20x128xf32>
    %44 = arith.divf %42, %43 : vector<20x128xf32>
    %c0_25 = arith.constant 0 : index
    %c0_26 = arith.constant 0 : index
    %45 = vector.load %arg4[%c0_25, %c0_26] : memref<20x128xf32, #tpu.memory_space<vmem>>, vector<20x128xf32>
    tpu.vector_store %arg4[%c0_25, %c0_26], %44 {strides = array<i32>} : memref<20x128xf32, #tpu.memory_space<vmem>>, vector<20x128xf32>,
    return
  }
  func.func @transform_0(%arg0: i32) -> (i32, i32) {
    %c0_i32 = arith.constant 0 : i32
    %c0_i32_0 = arith.constant 0 : i32
    return %c0_i32, %arg0 : i32, i32
  }
  func.func @transform_1(%arg0: i32) -> (i32, i32) {
    %c0_i32 = arith.constant 0 : i32
    %c0_i32_0 = arith.constant 0 : i32
    return %c0_i32, %arg0 : i32, i32
  }
  func.func @transform_2(%arg0: i32) -> (i32, i32) {
    %c0_i32 = arith.constant 0 : i32
    %c0_i32_0 = arith.constant 0 : i32
    %c0_i32_1 = arith.constant 0 : i32
    return %c0_i32, %c0_i32_0 : i32, i32
  }
  func.func @transform_3(%arg0: i32) -> (i32, i32) {
    %c0_i32 = arith.constant 0 : i32
    %c0_i32_0 = arith.constant 0 : i32
    return %c0_i32, %arg0 : i32, i32
  }
  func.func @transform_4(%arg0: i32) -> (i32, i32) {
    %c0_i32 = arith.constant 0 : i32
    %c0_i32_0 = arith.constant 0 : i32
    return %c0_i32, %arg0 : i32, i32
  }
}

</mosaic_0001>

<llo_original>
// kernel: vae_forward.1
$region0: #{vae_forward.1}
  #allocation0 [shape = 'u32[]', space=smem, size = 0x4, offset = 0x4, fixed_abs, tag = 'smem constant byte address 0x4 - core index']
  #allocation1 [shape = 'u32[144,128]{1,0:T(1,128)}', space=vmem, size = 0x12000, scoped, tag = 'internal scratch']
  %s0 = inlined_call_operand.vmem [shape: f32[20,128], index: 0, kind: input, shape index: {}]
  %s1 = inlined_call_operand.vmem [shape: f32[2,128], index: 1, kind: input, shape index: {}]
  %s2 = inlined_call_operand.vmem [shape: f32[72,32], index: 2, kind: input, shape index: {}]
  %s3 = inlined_call_operand.vmem [shape: f32[20,128], index: 3, kind: output, shape index: {0}]
  %s4 = inlined_call_operand.vmem [shape: f32[1,128], index: 4, kind: output, shape index: {1}]
  %5 = xla_tuple %s3, %s4
  %s6 = sld [smem:[#allocation0]]
  $region30: #{vae_forward.1} parent=0
    _
  %s8 = ssub.s32 1, %s6
  %s9 = scalar_select 0, %s8, %s6
  // Predicated region
  $region2: #{vae_forward.1} parent=0 // pred_check
    _
  $region3: #{vae_forward.1} parent=0 // pred_check_branch
    %11 = sbr.rel (0) target = $region5
  $region4: #{vae_forward.1} parent=0 // pred_region
    _
  $region5: #{vae_forward.1} parent=0 // pred_fallthru
    _
  // Predicated region
  $region6: #{vae_forward.1} parent=0 // pred_check
    _
  $region7: #{vae_forward.1} parent=0 // pred_check_branch
    %13 = sbr.rel (0) target = $region9
  $region8: #{vae_forward.1} parent=0 // pred_region
    _
  $region9: #{vae_forward.1} parent=0 // pred_fallthru
    _
  // Predicated region
  $region10: #{vae_forward.1} parent=0 // pred_check
    _
  $region11: #{vae_forward.1} parent=0 // pred_check_branch
    %15 = sbr.rel (0) target = $region13
  $region12: #{vae_forward.1} parent=0 // pred_region
    _
  $region13: #{vae_forward.1} parent=0 // pred_fallthru
    _
  %v16 = vld [vmem:[%s0] sm:$0xff]
  %v17 = vld [vmem:[%s0 + $0x8] sm:$0xff]
  %v18 = vld [vmem:[%s0 + $0x10] sm:$0xf]
  %v19 = vld [vmem:[%s1] sm:$0x3]
  %v20 = vld [vmem:[%s2] sm:$0xff]
  %v21 = vld [vmem:[%s2 + $0x8] sm:$0xff]
  %v22 = vld [vmem:[%s2 + $0x10] sm:$0xff]
  %v23 = vld [vmem:[%s2 + $0x18] sm:$0xff]
  %v24 = vld [vmem:[%s2 + $0x20] sm:$0xff]
  %v25 = vld [vmem:[%s2 + $0x28] sm:$0xff]
  %v26 = vld [vmem:[%s2 + $0x30] sm:$0xff]
  %v27 = vld [vmem:[%s2 + $0x38] sm:$0xff]
  %v28 = vld [vmem:[%s2 + $0x40] sm:$0xf]
  %30 = vset.pattern.permute.xlu0 24
  %31 = vperm.xlu0 %30, %v20
  %v32 = vpop.permute.xlu0 %31
  %35 = vset.pattern.permute.xlu0 24
  %36 = vperm.xlu0 %35, %v21
  %v37 = vpop.permute.xlu0 %36
  %vm39 = vcmask 162816
  %v40 = vsel %vm39, %v20, 0
  %v42 = vsel %vm39, %v21, 0
  %vm44 = vcmask 1043456
  %v46 = vsel %vm44, %v18, 0
  %48 = vmatprep.subr.mxu0 0.0
  %49 = vmatpush1.msra.mxu0 0.0
  %50 = vmatprep.subr.mxu0 0.0
  %51 = vmatpush1.msra.mxu0 0.0
  %52 = vmatprep.subr.mxu0 0.0
  %53 = vmatpush1.msra.mxu0 0.0
  %54 = vmatprep.subr.mxu0 0.0
  %55 = vmatpush1.msra.mxu0 0.0
  %56 = vmatprep.subr.mxu0 0.0
  %57 = vmatpush1.msra.mxu0 0.0
  %58 = vmatprep.subr.mxu0 0.0
  %59 = vmatpush1.msra.mxu0 0.0
  %60 = vmatprep.subr.mxu0 0.0
  %61 = vmatpush1.msra.mxu0 0.0
  %62 = vmatprep.subr.mxu0 0.0
  %63 = vmatpush1.msra.mxu0 0.0
  %64 = vmatprep.subr.mxu0 0.0
  %65 = vmatpush1.msra.mxu0 0.0
  %66 = vmatprep.subr.mxu0 0.0
  %67 = vmatpush1.msra.mxu0 0.0
  %68 = vmatprep.subr.mxu0 0.0
  %69 = vmatpush1.msra.mxu0 0.0
  %70 = vmatprep.subr.mxu0 0.0
  %71 = vmatpush1.msra.mxu0 0.0
  %72 = vmatprep.subr.mxu0 0.0
  %73 = vmatpush1.msra.mxu0 0.0
  %74 = vmatprep.subr.mxu0 0.0
  %75 = vmatpush1.msra.mxu0 %v46
  %76 = vmatprep.subr.mxu0 0.0
  %77 = vmatpush1.msra.mxu0 %v17
  %78 = vmatprep.subr.mxu0 0.0
  %79 = vmatpush1.msra.mxu0 %v16
  %80 = vmatprep.subr.mxu0 0.0
  %81 = vmatpush2.msra.mxu0 0.0
  %82 = vmatprep.subr.mxu0 0.0
  %83 = vmatpush2.msra.mxu0 0.0
  %84 = vmatprep.subr.mxu0 0.0
  %85 = vmatpush2.msra.mxu0 0.0
  %86 = vmatprep.subr.mxu0 0.0
  %87 = vmatpush2.msra.mxu0 0.0
  %88 = vmatprep.subr.mxu0 0.0
  %89 = vmatpush2.msra.mxu0 0.0
  %90 = vmatprep.subr.mxu0 0.0
  %91 = vmatpush2.msra.mxu0 0.0
  %92 = vmatprep.subr.mxu0 0.0
  %93 = vmatpush2.msra.mxu0 0.0
  %94 = vmatprep.subr.mxu0 0.0
  %95 = vmatpush2.msra.mxu0 0.0
  %96 = vmatprep.subr.mxu0 0.0
  %97 = vmatpush2.msra.mxu0 0.0
  %98 = vmatprep.subr.mxu0 0.0
  %99 = vmatpush2.msra.mxu0 0.0
  %100 = vmatprep.subr.mxu0 0.0
  %101 = vmatpush2.msra.mxu0 0.0
  %102 = vmatprep.subr.mxu0 0.0
  %103 = vmatpush2.msra.mxu0 0.0
  %104 = vmatprep.subr.mxu0 0.0
  %105 = vmatpush2.msra.mxu0 0.0
  %106 = vmatprep.subr.mxu0 0.0
  %107 = vmatpush2.msra.mxu0 0.0
  %108 = vmatprep.subr.mxu0 0.0
  %109 = vmatpush2.msra.mxu0 0.0
  %110 = vmatprep.subr.mxu0 0.0
  %111 = vmatpush2.msra.mxu0 0.0
  %112 = vmatprep.mubr.f32.mxu0 0.0
  %113 = vmatmul.mubr.f32.gmra.mxu0 %v40
  %v114 = vpop.f32.mrf.mxu0
  %v115 = vadd.f32 %v32, %v114
  %v116 = vpop.f32.mrf.mxu0
  %117 = vmatprep.mubr.f32.mxu0 0.0
  %118 = vmatmul.mubr.f32.gmra.mxu0 %v42
  %v119 = vpop.f32.mrf.mxu0
  %v120 = vadd.f32 %v37, %v119
  %v121 = vpop.f32.mrf.mxu0
  %122 = vdwg.mxu0
  %v123 = vmax.f32 %v115, 0.0
  %v124 = vmax.f32 %v120, 0.0
  %126 = vset.pattern.permute.xlu0 24
  %127 = vperm.xlu0 %126, %v22
  %v128 = vpop.permute.xlu0 %127
  %131 = vset.pattern.permute.xlu0 24
  %132 = vperm.xlu0 %131, %v23
  %v133 = vpop.permute.xlu0 %132
  %vm135 = vcmask 130048
  %v136 = vsel %vm135, %v22, 0
  %v138 = vsel %vm135, %v23, 0
  %140 = vmatprep.subr.mxu0 0.0
  %141 = vmatpush1.msra.mxu0 0.0
  %142 = vmatprep.subr.mxu0 0.0
  %143 = vmatpush1.msra.mxu0 0.0
  %144 = vmatprep.subr.mxu0 0.0
  %145 = vmatpush1.msra.mxu0 0.0
  %146 = vmatprep.subr.mxu0 0.0
  %147 = vmatpush1.msra.mxu0 0.0
  %148 = vmatprep.subr.mxu0 0.0
  %149 = vmatpush1.msra.mxu0 0.0
  %150 = vmatprep.subr.mxu0 0.0
  %151 = vmatpush1.msra.mxu0 0.0
  %152 = vmatprep.subr.mxu0 0.0
  %153 = vmatpush1.msra.mxu0 0.0
  %154 = vmatprep.subr.mxu0 0.0
  %155 = vmatpush1.msra.mxu0 0.0
  %156 = vmatprep.subr.mxu0 0.0
  %157 = vmatpush1.msra.mxu0 0.0
  %158 = vmatprep.subr.mxu0 0.0
  %159 = vmatpush1.msra.mxu0 0.0
  %160 = vmatprep.subr.mxu0 0.0
  %161 = vmatpush1.msra.mxu0 0.0
  %162 = vmatprep.subr.mxu0 0.0
  %163 = vmatpush1.msra.mxu0 0.0
  %164 = vmatprep.subr.mxu0 0.0
  %165 = vmatpush1.msra.mxu0 0.0
  %166 = vmatprep.subr.mxu0 0.0
  %167 = vmatpush1.msra.mxu0 0.0
  %168 = vmatprep.subr.mxu0 0.0
  %169 = vmatpush1.msra.mxu0 %v124
  %170 = vmatprep.subr.mxu0 0.0
  %171 = vmatpush1.msra.mxu0 %v123
  %172 = vmatprep.subr.mxu0 0.0
  %173 = vmatpush2.msra.mxu0 0.0
  %174 = vmatprep.subr.mxu0 0.0
  %175 = vmatpush2.msra.mxu0 0.0
  %176 = vmatprep.subr.mxu0 0.0
  %177 = vmatpush2.msra.mxu0 0.0
  %178 = vmatprep.subr.mxu0 0.0
  %179 = vmatpush2.msra.mxu0 0.0
  %180 = vmatprep.subr.mxu0 0.0
  %181 = vmatpush2.msra.mxu0 0.0
  %182 = vmatprep.subr.mxu0 0.0
  %183 = vmatpush2.msra.mxu0 0.0
  %184 = vmatprep.subr.mxu0 0.0
  %185 = vmatpush2.msra.mxu0 0.0
  %186 = vmatprep.subr.mxu0 0.0
  %187 = vmatpush2.msra.mxu0 0.0
  %188 = vmatprep.subr.mxu0 0.0
  %189 = vmatpush2.msra.mxu0 0.0
  %190 = vmatprep.subr.mxu0 0.0
  %191 = vmatpush2.msra.mxu0 0.0
  %192 = vmatprep.subr.mxu0 0.0
  %193 = vmatpush2.msra.mxu0 0.0
  %194 = vmatprep.subr.mxu0 0.0
  %195 = vmatpush2.msra.mxu0 0.0
  %196 = vmatprep.subr.mxu0 0.0
  %197 = vmatpush2.msra.mxu0 0.0
  %198 = vmatprep.subr.mxu0 0.0
  %199 = vmatpush2.msra.mxu0 0.0
  %200 = vmatprep.subr.mxu0 0.0
  %201 = vmatpush2.msra.mxu0 0.0
  %202 = vmatprep.subr.mxu0 0.0
  %203 = vmatpush2.msra.mxu0 0.0
  %204 = vmatprep.mubr.f32.mxu0 0.0
  %205 = vmatmul.mubr.f32.gmra.mxu0 %v136
  %v206 = vpop.f32.mrf.mxu0
  %v207 = vadd.f32 %v128, %v206
  %v208 = vpop.f32.mrf.mxu0
  %209 = vmatprep.mubr.f32.mxu0 0.0
  %210 = vmatmul.mubr.f32.gmra.mxu0 %v138
  %v211 = vpop.f32.mrf.mxu0
  %v212 = vadd.f32 %v133, %v211
  %v213 = vpop.f32.mrf.mxu0
  %214 = vdwg.mxu0
  %v215 = vmul.f32 %v212, 1.442695
  %v216 = vpow.pop %v215
  %v217 = vmul.f32 %v216, %v19
  %v218 = vadd.f32 %v207, %v217
  %v219 = vmul.f32 %v216, %v216
  %v220 = vmul.f32 %v207, %v207
  %v221 = vadd.f32 %v219, %v220
  %v222 = vsub.f32 %v221, %v212
  %v223 = vsub.f32 %v222, 0.5
  %vm224 = vcmask 1041408
  %v225 = vsel %vm224, %v223, 0.0
  %v226 = vrot.slane %v225, 4
  %v227 = vadd.f32 %v225, %v226
  %v228 = vrot.slane %v227, 2
  %v229 = vadd.f32 %v227, %v228
  %v230 = vrot.slane %v229, 1
  %v231 = vadd.f32 %v229, %v230
  %232 = vst [vmem:[%s4] sm:$0x1] %v231
  %234 = vset.pattern.permute.xlu0 24
  %235 = vperm.xlu0 %234, %v24
  %v236 = vpop.permute.xlu0 %235
  %239 = vset.pattern.permute.xlu0 24
  %240 = vperm.xlu0 %239, %v25
  %v241 = vpop.permute.xlu0 %240
  %vm243 = vcmask 15360
  %v244 = vsel %vm243, %v24, 0
  %v246 = vsel %vm243, %v25, 0
  %v249 = vsel %vm224, %v218, 0
  %251 = vmatprep.subr.mxu0 0.0
  %252 = vmatpush1.msra.mxu0 0.0
  %253 = vmatprep.subr.mxu0 0.0
  %254 = vmatpush1.msra.mxu0 0.0
  %255 = vmatprep.subr.mxu0 0.0
  %256 = vmatpush1.msra.mxu0 0.0
  %257 = vmatprep.subr.mxu0 0.0
  %258 = vmatpush1.msra.mxu0 0.0
  %259 = vmatprep.subr.mxu0 0.0
  %260 = vmatpush1.msra.mxu0 0.0
  %261 = vmatprep.subr.mxu0 0.0
  %262 = vmatpush1.msra.mxu0 0.0
  %263 = vmatprep.subr.mxu0 0.0
  %264 = vmatpush1.msra.mxu0 0.0
  %265 = vmatprep.subr.mxu0 0.0
  %266 = vmatpush1.msra.mxu0 0.0
  %267 = vmatprep.subr.mxu0 0.0
  %268 = vmatpush1.msra.mxu0 0.0
  %269 = vmatprep.subr.mxu0 0.0
  %270 = vmatpush1.msra.mxu0 0.0
  %271 = vmatprep.subr.mxu0 0.0
  %272 = vmatpush1.msra.mxu0 0.0
  %273 = vmatprep.subr.mxu0 0.0
  %274 = vmatpush1.msra.mxu0 0.0
  %275 = vmatprep.subr.mxu0 0.0
  %276 = vmatpush1.msra.mxu0 0.0
  %277 = vmatprep.subr.mxu0 0.0
  %278 = vmatpush1.msra.mxu0 0.0
  %279 = vmatprep.subr.mxu0 0.0
  %280 = vmatpush1.msra.mxu0 0.0
  %281 = vmatprep.subr.mxu0 0.0
  %282 = vmatpush1.msra.mxu0 %v249
  %283 = vmatprep.subr.mxu0 0.0
  %284 = vmatpush2.msra.mxu0 0.0
  %285 = vmatprep.subr.mxu0 0.0
  %286 = vmatpush2.msra.mxu0 0.0
  %287 = vmatprep.subr.mxu0 0.0
  %288 = vmatpush2.msra.mxu0 0.0
  %289 = vmatprep.subr.mxu0 0.0
  %290 = vmatpush2.msra.mxu0 0.0
  %291 = vmatprep.subr.mxu0 0.0
  %292 = vmatpush2.msra.mxu0 0.0
  %293 = vmatprep.subr.mxu0 0.0
  %294 = vmatpush2.msra.mxu0 0.0
  %295 = vmatprep.subr.mxu0 0.0
  %296 = vmatpush2.msra.mxu0 0.0
  %297 = vmatprep.subr.mxu0 0.0
  %298 = vmatpush2.msra.mxu0 0.0
  %299 = vmatprep.subr.mxu0 0.0
  %300 = vmatpush2.msra.mxu0 0.0
  %301 = vmatprep.subr.mxu0 0.0
  %302 = vmatpush2.msra.mxu0 0.0
  %303 = vmatprep.subr.mxu0 0.0
  %304 = vmatpush2.msra.mxu0 0.0
  %305 = vmatprep.subr.mxu0 0.0
  %306 = vmatpush2.msra.mxu0 0.0
  %307 = vmatprep.subr.mxu0 0.0
  %308 = vmatpush2.msra.mxu0 0.0
  %309 = vmatprep.subr.mxu0 0.0
  %310 = vmatpush2.msra.mxu0 0.0
  %311 = vmatprep.subr.mxu0 0.0
  %312 = vmatpush2.msra.mxu0 0.0
  %313 = vmatprep.subr.mxu0 0.0
  %314 = vmatpush2.msra.mxu0 0.0
  %315 = vmatprep.mubr.f32.mxu0 0.0
  %316 = vmatmul.mubr.f32.gmra.mxu0 %v244
  %v317 = vpop.f32.mrf.mxu0
  %v318 = vadd.f32 %v236, %v317
  %v319 = vpop.f32.mrf.mxu0
  %320 = vmatprep.mubr.f32.mxu0 0.0
  %321 = vmatmul.mubr.f32.gmra.mxu0 %v246
  %v322 = vpop.f32.mrf.mxu0
  %v323 = vadd.f32 %v241, %v322
  %v324 = vpop.f32.mrf.mxu0
  %325 = vdwg.mxu0
  %v326 = vmax.f32 %v318, 0.0
  %v327 = vmax.f32 %v323, 0.0
  %329 = vset.pattern.permute.xlu0 24
  %330 = vperm.xlu0 %329, %v26
  %v331 = vpop.permute.xlu0 %330
  %334 = vset.pattern.permute.xlu0 24
  %335 = vperm.xlu0 %334, %v27
  %v336 = vpop.permute.xlu0 %335
  %339 = vset.pattern.permute.xlu0 24
  %340 = vperm.xlu0 %339, %v28
  %v341 = vpop.permute.xlu0 %340
  %v343 = vsel %vm135, %v26, 0
  %v345 = vsel %vm135, %v27, 0
  %v347 = vsel %vm135, %v28, 0
  %349 = vmatprep.subr.mxu0 0.0
  %350 = vmatpush1.msra.mxu0 0.0
  %351 = vmatprep.subr.mxu0 0.0
  %352 = vmatpush1.msra.mxu0 0.0
  %353 = vmatprep.subr.mxu0 0.0
  %354 = vmatpush1.msra.mxu0 0.0
  %355 = vmatprep.subr.mxu0 0.0
  %356 = vmatpush1.msra.mxu0 0.0
  %357 = vmatprep.subr.mxu0 0.0
  %358 = vmatpush1.msra.mxu0 0.0
  %359 = vmatprep.subr.mxu0 0.0
  %360 = vmatpush1.msra.mxu0 0.0
  %361 = vmatprep.subr.mxu0 0.0
  %362 = vmatpush1.msra.mxu0 0.0
  %363 = vmatprep.subr.mxu0 0.0
  %364 = vmatpush1.msra.mxu0 0.0
  %365 = vmatprep.subr.mxu0 0.0
  %366 = vmatpush1.msra.mxu0 0.0
  %367 = vmatprep.subr.mxu0 0.0
  %368 = vmatpush1.msra.mxu0 0.0
  %369 = vmatprep.subr.mxu0 0.0
  %370 = vmatpush1.msra.mxu0 0.0
  %371 = vmatprep.subr.mxu0 0.0
  %372 = vmatpush1.msra.mxu0 0.0
  %373 = vmatprep.subr.mxu0 0.0
  %374 = vmatpush1.msra.mxu0 0.0
  %375 = vmatprep.subr.mxu0 0.0
  %376 = vmatpush1.msra.mxu0 0.0
  %377 = vmatprep.subr.mxu0 0.0
  %378 = vmatpush1.msra.mxu0 %v327
  %379 = vmatprep.subr.mxu0 0.0
  %380 = vmatpush1.msra.mxu0 %v326
  %381 = vmatprep.subr.mxu0 0.0
  %382 = vmatpush2.msra.mxu0 0.0
  %383 = vmatprep.subr.mxu0 0.0
  %384 = vmatpush2.msra.mxu0 0.0
  %385 = vmatprep.subr.mxu0 0.0
  %386 = vmatpush2.msra.mxu0 0.0
  %387 = vmatprep.subr.mxu0 0.0
  %388 = vmatpush2.msra.mxu0 0.0
  %389 = vmatprep.subr.mxu0 0.0
  %390 = vmatpush2.msra.mxu0 0.0
  %391 = vmatprep.subr.mxu0 0.0
  %392 = vmatpush2.msra.mxu0 0.0
  %393 = vmatprep.subr.mxu0 0.0
  %394 = vmatpush2.msra.mxu0 0.0
  %395 = vmatprep.subr.mxu0 0.0
  %396 = vmatpush2.msra.mxu0 0.0
  %397 = vmatprep.subr.mxu0 0.0
  %398 = vmatpush2.msra.mxu0 0.0
  %399 = vmatprep.subr.mxu0 0.0
  %400 = vmatpush2.msra.mxu0 0.0
  %401 = vmatprep.subr.mxu0 0.0
  %402 = vmatpush2.msra.mxu0 0.0
  %403 = vmatprep.subr.mxu0 0.0
  %404 = vmatpush2.msra.mxu0 0.0
  %405 = vmatprep.subr.mxu0 0.0
  %406 = vmatpush2.msra.mxu0 0.0
  %407 = vmatprep.subr.mxu0 0.0
  %408 = vmatpush2.msra.mxu0 0.0
  %409 = vmatprep.subr.mxu0 0.0
  %410 = vmatpush2.msra.mxu0 0.0
  %411 = vmatprep.subr.mxu0 0.0
  %412 = vmatpush2.msra.mxu0 0.0
  %413 = vmatprep.mubr.f32.mxu0 0.0
  %414 = vmatmul.mubr.f32.gmra.mxu0 %v343
  %v415 = vpop.f32.mrf.mxu0
  %v416 = vadd.f32 %v331, %v415
  %v417 = vpop.f32.mrf.mxu0
  %418 = vmatprep.mubr.f32.mxu0 0.0
  %419 = vmatmul.mubr.f32.gmra.mxu0 %v345
  %v420 = vpop.f32.mrf.mxu0
  %v421 = vadd.f32 %v336, %v420
  %v422 = vpop.f32.mrf.mxu0
  %423 = vmatprep.mubr.f32.mxu0 0.0
  %424 = vmatmul.mubr.f32.gmra.mxu0 %v347
  %v425 = vpop.f32.mrf.mxu0
  %v426 = vadd.f32 %v341, %v425
  %v427 = vpop.f32.mrf.mxu0
  %428 = vdwg.mxu0
  %v429 = vxor.u32 %v416, 2147483648
  %v430 = vxor.u32 %v421, 2147483648
  %v431 = vxor.u32 %v426, 2147483648
  %v432 = vmul.f32 %v429, 1.442695
  %v433 = vpow.pop %v432
  %v434 = vmul.f32 %v430, 1.442695
  %v435 = vpow.pop %v434
  %v436 = vmul.f32 %v431, 1.442695
  %v437 = vpow.pop %v436
  %v438 = vadd.f32 %v433, 1.0
  %v439 = vadd.f32 %v435, 1.0
  %v440 = vadd.f32 %v437, 1.0
  %v441 = vrcp.pop %v438
  %v442 = vmul.f32 1.0, %v441
  %v443 = vrcp.pop %v439
  %v444 = vmul.f32 1.0, %v443
  %v445 = vrcp.pop %v440
  %v446 = vmul.f32 1.0, %v445
  %447 = vst [vmem:[%s3] sm:$0xff] %v442
  %448 = vst [vmem:[%s3 + $0x8] sm:$0xff] %v444
  %449 = vst [vmem:[%s3 + $0x10] sm:$0xf] %v446
  // Predicated region
  $region14: #{vae_forward.1} parent=0 // pred_check
    _
  $region15: #{vae_forward.1} parent=0 // pred_check_branch
    %451 = sbr.rel (0) target = $region17
  $region16: #{vae_forward.1} parent=0 // pred_region
    _
  $region17: #{vae_forward.1} parent=0 // pred_fallthru
    _
  // Predicated region
  $region18: #{vae_forward.1} parent=0 // pred_check
    _
  $region19: #{vae_forward.1} parent=0 // pred_check_branch
    %453 = sbr.rel (0) target = $region21
  $region20: #{vae_forward.1} parent=0 // pred_region
    _
  $region21: #{vae_forward.1} parent=0 // pred_fallthru
    _
  // Predicated region
  $region22: #{vae_forward.1} parent=0 // pred_check
    _
  $region23: #{vae_forward.1} parent=0 // pred_check_branch
    %455 = sbr.rel (0) target = $region25
  $region24: #{vae_forward.1} parent=0 // pred_region
    _
  $region25: #{vae_forward.1} parent=0 // pred_fallthru
    _
  // Predicated region
  $region26: #{vae_forward.1} parent=0 // pred_check
    _
  $region27: #{vae_forward.1} parent=0 // pred_check_branch
    %457 = sbr.rel (0) target = $region29
  $region28: #{vae_forward.1} parent=0 // pred_region
    _
  $region29: #{vae_forward.1} parent=0 // pred_fallthru
    _

</llo_original>
